<compile_context>
chip_gen: v7x
topology: tpu7x:2x2x1
jax: 0.10.0
libtpu: 0.0.40
codegen_flags: <defaults>
</compile_context>

<pallas_src>
import math

import jax
import jax.numpy as jnp
import numpy as np
from jax.experimental import pallas as pl
from jax.experimental.pallas import tpu as pltpu


# ----------------------------- kernel ---------------------------------------


def ris_critic_kernel(x_ref, w1_ref, b1_ref, w2_ref, b2_ref, w3_ref, b3_ref,
                      q_ref):
    # x: [TB, state+action]   (both Q-nets consume the same concatenated input)
    x = x_ref[...]

    # Fused layer 1: W1 = [W1_q1 | W1_q2]  -> one MXU pass for both nets.
    h = jnp.dot(x, w1_ref[...], preferred_element_type=jnp.float32) + b1_ref[...]
    h = jnp.maximum(h, 0.0)

    # Fused layer 2: block-diagonal weights keep the two nets independent.
    h = jnp.dot(h.astype(w2_ref.dtype), w2_ref[...],
                preferred_element_type=jnp.float32) + b2_ref[...]
    h = jnp.maximum(h, 0.0)

    # Fused output heads: block-diagonal [2*h2, 2] -> q = [q1 | q2].
    q = jnp.dot(h.astype(w3_ref.dtype), w3_ref[...],
                preferred_element_type=jnp.float32) + b3_ref[...]
    q_ref[...] = q.astype(q_ref.dtype)


# ----------------------------- wrapper ---------------------------------------


def _pick_batch_tile(batch):
    # Largest convenient tile that divides the batch (512-1024 rows is the
    # sweet spot once the batch is big enough); tiny/odd batches fall back to
    # a single full-array block.
    for tb in (1024, 512, 256, 128, 64, 32, 16, 8):
        if batch % tb == 0:
            return tb
    return batch


def ris_critic_forward(state, action, fused_params):
    """Pallas forward. Returns (q1, q2) just like RIS_Critic.forward."""
    w1, b1 = fused_params["w1"], fused_params["b1"]
    w2, b2 = fused_params["w2"], fused_params["b2"]
    w3, b3 = fused_params["w3"], fused_params["b3"]

    x = jnp.concatenate([state, action], axis=1).astype(w1.dtype)
    batch, in_dim = x.shape

    tb = _pick_batch_tile(batch)
    grid = (batch // tb,)

    def const_spec(arr):
        # Weights/biases: one block covering the whole array, same block index
        # at every grid step -> DMA'd once, VMEM-resident across batch tiles.
        return pl.BlockSpec(arr.shape, lambda i: (0,) * arr.ndim)

    q_both = pl.pallas_call(
        ris_critic_kernel,
        out_shape=jax.ShapeDtypeStruct((batch, 2), jnp.float32),
        grid=grid,
        in_specs=[
            pl.BlockSpec((tb, in_dim), lambda i: (i, 0)),  # batch-tiled input
            const_spec(w1), const_spec(b1),
            const_spec(w2), const_spec(b2),
            const_spec(w3), const_spec(b3),
        ],
        out_specs=pl.BlockSpec((tb, 2), lambda i: (i, 0)),
        compiler_params=pltpu.CompilerParams(
            dimension_semantics=("parallel",)),
    )(x, w1, b1, w2, b2, w3, b3)

    q1 = q_both[:, 0:1]
    q2 = q_both[:, 1:2]
    return q1, q2


# ------------------------ parameter construction -----------------------------


def init_params(key, state_dim, action_dim, hid_shape):
    """Per-network parameters matching build_net([sd+ad, h1, h2, 1], ReLU, Identity)."""
    in_dim = state_dim + action_dim
    dims = [in_dim] + list(hid_shape) + [1]
    ks = jax.random.split(key, 4 * (len(dims) - 1))

    def lin(kw, kb, fan_in, fan_out):
        bound = 1.0 / math.sqrt(fan_in)
        w = jax.random.uniform(kw, (fan_in, fan_out), jnp.float32, -bound, bound)
        b = jax.random.uniform(kb, (fan_out,), jnp.float32, -bound, bound)
        return w, b

    def net(offset):
        layers = []
        for j in range(len(dims) - 1):
            layers.append(lin(ks[offset + 2 * j], ks[offset + 2 * j + 1],
                              dims[j], dims[j + 1]))
        return layers

    return {"q1": net(0), "q2": net(2 * (len(dims) - 1))}


def fuse_twin_params(params, matmul_dtype=jnp.float32):
    """Fuse the two Q-networks into one stack of (concat / block-diag) weights.

    Set matmul_dtype=jnp.bfloat16 for large-batch inference on v6e/v7x (the
    kernel still accumulates in f32); biases stay f32.
    """
    (w1a, b1a), (w2a, b2a), (w3a, b3a) = params["q1"]
    (w1b, b1b), (w2b, b2b), (w3b, b3b) = params["q2"]

    def block_diag(a, b):
        m1, n1 = a.shape
        m2, n2 = b.shape
        out = jnp.zeros((m1 + m2, n1 + n2), a.dtype)
        out = out.at[:m1, :n1].set(a)
        out = out.at[m1:, n1:].set(b)
        return out

    return {
        "w1": jnp.concatenate([w1a, w1b], axis=1).astype(matmul_dtype),
        "b1": jnp.concatenate([b1a, b1b])[None, :],
        "w2": block_diag(w2a, w2b).astype(matmul_dtype),
        "b2": jnp.concatenate([b2a, b2b])[None, :],
        "w3": block_diag(w3a, w3b).astype(matmul_dtype),
        "b3": jnp.concatenate([b3a, b3b])[None, :],
    }


# ----------------------------- reference -------------------------------------


def ris_critic_ref(state, action, params):
    x = jnp.concatenate([state, action], axis=1)

    def mlp(inp, net):
        (w1, b1), (w2, b2), (w3, b3) = net
        h = jnp.maximum(inp @ w1 + b1, 0.0)
        h = jnp.maximum(h @ w2 + b2, 0.0)
        return h @ w3 + b3

    return mlp(x, params["q1"]), mlp(x, params["q2"])


# ------------------------------- demo ----------------------------------------


if __name__ == "__main__":
    state_dim_RIS = 16
    action_dim_RIS = 4
    hid_shape = (32, 32)
    batch = 8

    key = jax.random.PRNGKey(0)
    k_state, k_action, k_params = jax.random.split(key, 3)

    state = jax.random.normal(k_state, (batch, state_dim_RIS), jnp.float32)
    action = jax.random.normal(k_action, (batch, action_dim_RIS), jnp.float32)
    params = init_params(k_params, state_dim_RIS, action_dim_RIS, hid_shape)
    fused = fuse_twin_params(params)  # matmul_dtype=jnp.bfloat16 for big-batch inference

    q1, q2 = ris_critic_forward(state, action, fused)
    jax.block_until_ready((q1, q2))

    assert q1.shape == (batch, 1) and q2.shape == (batch, 1)

    q1_ref, q2_ref = ris_critic_ref(state, action, params)
    np.testing.assert_allclose(np.asarray(q1), np.asarray(q1_ref), rtol=1e-5, atol=1e-5)
    np.testing.assert_allclose(np.asarray(q2), np.asarray(q2_ref), rtol=1e-5, atol=1e-5)

    print("KERNEL_OK")
</pallas_src>

<mosaic_0001>
module attributes {stable_mosaic.version = 11 : i64} {
  func.func @ris_critic_kernel(%arg0: i32, %arg1: memref<8x20xf32, #tpu.memory_space<vmem>>, %arg2: memref<20x64xf32, #tpu.memory_space<vmem>>, %arg3: memref<1x64xf32, #tpu.memory_space<vmem>>, %arg4: memref<64x64xf32, #tpu.memory_space<vmem>>, %arg5: memref<1x64xf32, #tpu.memory_space<vmem>>, %arg6: memref<64x2xf32, #tpu.memory_space<vmem>>, %arg7: memref<1x2xf32, #tpu.memory_space<vmem>>, %arg8: memref<8x2xf32, #tpu.memory_space<vmem>>) attributes {dimension_semantics = [#tpu.dimension_semantics<parallel>], iteration_bounds = array<i64: 1>, scalar_prefetch = 0 : i64, scratch_operands = 0 : i64, tpu.core_type = #tpu.core_type<tc>, window_params = [{transform_indices = @transform_0, window_bounds = array<i64: 8, 20>}, {pipeline_mode = #tpu.pipeline_mode<synchronous>, transform_indices = @transform_1, window_bounds = array<i64: 20, 64>}, {pipeline_mode = #tpu.pipeline_mode<synchronous>, transform_indices = @transform_2, window_bounds = array<i64: 1, 64>}, {pipeline_mode = #tpu.pipeline_mode<synchronous>, transform_indices = @transform_3, window_bounds = array<i64: 64, 64>}, {pipeline_mode = #tpu.pipeline_mode<synchronous>, transform_indices = @transform_4, window_bounds = array<i64: 1, 64>}, {pipeline_mode = #tpu.pipeline_mode<synchronous>, transform_indices = @transform_5, window_bounds = array<i64: 64, 2>}, {pipeline_mode = #tpu.pipeline_mode<synchronous>, transform_indices = @transform_6, window_bounds = array<i64: 1, 2>}, {transform_indices = @transform_7, window_bounds = array<i64: 8, 2>}]} {
    %c0 = arith.constant 0 : index
    %c0_0 = arith.constant 0 : index
    %0 = vector.load %arg1[%c0, %c0_0] : memref<8x20xf32, #tpu.memory_space<vmem>>, vector<8x20xf32>
    %c0_1 = arith.constant 0 : index
    %c0_2 = arith.constant 0 : index
    %1 = vector.load %arg2[%c0_1, %c0_2] : memref<20x64xf32, #tpu.memory_space<vmem>>, vector<20x64xf32>
    %cst = arith.constant dense<0.000000e+00> : vector<8x64xf32>
    %2 = tpu.matmul %0, %1, %cst {dimension_numbers = #tpu.dot_dimension_numbers<[1], [0], [0], [1], [0, 0, 1, 1], [], []>} : vector<8x20xf32>, vector<20x64xf32>, vector<8x64xf32> -> vector<8x64xf32>
    %c0_3 = arith.constant 0 : index
    %c0_4 = arith.constant 0 : index
    %3 = vector.load %arg3[%c0_3, %c0_4] : memref<1x64xf32, #tpu.memory_space<vmem>>, vector<1x64xf32>
    %4 = vector.broadcast %3 : vector<1x64xf32> to vector<8x64xf32>
    %5 = arith.addf %2, %4 : vector<8x64xf32>
    %cst_5 = arith.constant 0.000000e+00 : f32
    %6 = vector.broadcast %cst_5 : f32 to vector<8x64xf32>
    %7 = arith.maximumf %5, %6 : vector<8x64xf32>
    %c0_6 = arith.constant 0 : index
    %c0_7 = arith.constant 0 : index
    %8 = vector.load %arg4[%c0_6, %c0_7] : memref<64x64xf32, #tpu.memory_space<vmem>>, vector<64x64xf32>
    %cst_8 = arith.constant dense<0.000000e+00> : vector<8x64xf32>
    %9 = tpu.matmul %7, %8, %cst_8 {dimension_numbers = #tpu.dot_dimension_numbers<[1], [0], [0], [1], [0, 0, 1, 1], [], []>} : vector<8x64xf32>, vector<64x64xf32>, vector<8x64xf32> -> vector<8x64xf32>
    %c0_9 = arith.constant 0 : index
    %c0_10 = arith.constant 0 : index
    %10 = vector.load %arg5[%c0_9, %c0_10] : memref<1x64xf32, #tpu.memory_space<vmem>>, vector<1x64xf32>
    %11 = vector.broadcast %10 : vector<1x64xf32> to vector<8x64xf32>
    %12 = arith.addf %9, %11 : vector<8x64xf32>
    %cst_11 = arith.constant 0.000000e+00 : f32
    %13 = vector.broadcast %cst_11 : f32 to vector<8x64xf32>
    %14 = arith.maximumf %12, %13 : vector<8x64xf32>
    %c0_12 = arith.constant 0 : index
    %c0_13 = arith.constant 0 : index
    %15 = vector.load %arg6[%c0_12, %c0_13] : memref<64x2xf32, #tpu.memory_space<vmem>>, vector<64x2xf32>
    %cst_14 = arith.constant dense<0.000000e+00> : vector<8x2xf32>
    %16 = tpu.matmul %14, %15, %cst_14 {dimension_numbers = #tpu.dot_dimension_numbers<[1], [0], [0], [1], [0, 0, 1, 1], [], []>} : vector<8x64xf32>, vector<64x2xf32>, vector<8x2xf32> -> vector<8x2xf32>
    %c0_15 = arith.constant 0 : index
    %c0_16 = arith.constant 0 : index
    %17 = vector.load %arg7[%c0_15, %c0_16] : memref<1x2xf32, #tpu.memory_space<vmem>>, vector<1x2xf32>
    %18 = vector.broadcast %17 : vector<1x2xf32> to vector<8x2xf32>
    %19 = arith.addf %16, %18 : vector<8x2xf32>
    %c0_17 = arith.constant 0 : index
    %c0_18 = arith.constant 0 : index
    %20 = vector.load %arg8[%c0_17, %c0_18] : memref<8x2xf32, #tpu.memory_space<vmem>>, vector<8x2xf32>
    tpu.vector_store %arg8[%c0_17, %c0_18], %19 {strides = array<i32>} : memref<8x2xf32, #tpu.memory_space<vmem>>, vector<8x2xf32>,
    return
  }
  func.func @transform_0(%arg0: i32) -> (i32, i32) {
    %c0_i32 = arith.constant 0 : i32
    %c0_i32_0 = arith.constant 0 : i32
    return %arg0, %c0_i32 : i32, i32
  }
  func.func @transform_1(%arg0: i32) -> (i32, i32) {
    %c0_i32 = arith.constant 0 : i32
    %c0_i32_0 = arith.constant 0 : i32
    %c0_i32_1 = arith.constant 0 : i32
    return %c0_i32, %c0_i32_0 : i32, i32
  }
  func.func @transform_2(%arg0: i32) -> (i32, i32) {
    %c0_i32 = arith.constant 0 : i32
    %c0_i32_0 = arith.constant 0 : i32
    %c0_i32_1 = arith.constant 0 : i32
    return %c0_i32, %c0_i32_0 : i32, i32
  }
  func.func @transform_3(%arg0: i32) -> (i32, i32) {
    %c0_i32 = arith.constant 0 : i32
    %c0_i32_0 = arith.constant 0 : i32
    %c0_i32_1 = arith.constant 0 : i32
    return %c0_i32, %c0_i32_0 : i32, i32
  }
  func.func @transform_4(%arg0: i32) -> (i32, i32) {
    %c0_i32 = arith.constant 0 : i32
    %c0_i32_0 = arith.constant 0 : i32
    %c0_i32_1 = arith.constant 0 : i32
    return %c0_i32, %c0_i32_0 : i32, i32
  }
  func.func @transform_5(%arg0: i32) -> (i32, i32) {
    %c0_i32 = arith.constant 0 : i32
    %c0_i32_0 = arith.constant 0 : i32
    %c0_i32_1 = arith.constant 0 : i32
    return %c0_i32, %c0_i32_0 : i32, i32
  }
  func.func @transform_6(%arg0: i32) -> (i32, i32) {
    %c0_i32 = arith.constant 0 : i32
    %c0_i32_0 = arith.constant 0 : i32
    %c0_i32_1 = arith.constant 0 : i32
    return %c0_i32, %c0_i32_0 : i32, i32
  }
  func.func @transform_7(%arg0: i32) -> (i32, i32) {
    %c0_i32 = arith.constant 0 : i32
    %c0_i32_0 = arith.constant 0 : i32
    return %arg0, %c0_i32 : i32, i32
  }
}

</mosaic_0001>

<llo_original>
// kernel: tpu_custom_call.1
$region0: #{tpu_custom_call.1}
  #allocation0 [shape = 'u32[]', space=smem, size = 0x4, offset = 0x4, fixed_abs, tag = 'smem constant byte address 0x4 - core index']
  #allocation1 [shape = 'u32[144,128]{1,0:T(1,128)}', space=vmem, size = 0x12000, scoped, tag = 'internal scratch']
  %s0 = inlined_call_operand.vmem [shape: f32[8,20], index: 0, kind: input, shape index: {}]
  %s1 = inlined_call_operand.hbm [shape: f32[20,64], index: 1, kind: input, shape index: {}]
  %s2 = inlined_call_operand.vmem [shape: f32[1,64], index: 2, kind: input, shape index: {}]
  %s3 = inlined_call_operand.vmem [shape: f32[64,64], index: 3, kind: input, shape index: {}]
  %s4 = inlined_call_operand.vmem [shape: f32[1,64], index: 4, kind: input, shape index: {}]
  %s5 = inlined_call_operand.vmem [shape: f32[64,2], index: 5, kind: input, shape index: {}]
  %s6 = inlined_call_operand.vmem [shape: f32[1,2], index: 6, kind: input, shape index: {}]
  %s7 = inlined_call_operand.vmem [shape: f32[8,2], index: 7, kind: output, shape index: {}]
  %s8 = sld [smem:[#allocation0]]
  $region42: #{tpu_custom_call.1} parent=0
    _
  %s10 = ssub.s32 1, %s8
  %s11 = scalar_select 0, %s10, %s8
  $region1: #{tpu_custom_call.1} parent=0
    #allocation2 [shape = 'u8[12288]{0}', space=vmem, size = 0x3000, scoped, tag = 'input window, operand 1, single buffered']
    #allocation3 [shape = 's32[1]{0}', space=sflag, size = 0x4, scoped, tag = 'scoped memory for tpu_custom_call.1']
    %12 = vsyncpa [#allocation3], 0
    // Predicated region
    $region2: #{tpu_custom_call.1} parent=1 // pred_check
      _
    $region3: #{tpu_custom_call.1} parent=1 // pred_check_branch
      %14 = sbr.rel (0) target = $region5
    $region4: #{tpu_custom_call.1} parent=1 // pred_region
      _
    $region5: #{tpu_custom_call.1} parent=1 // pred_fallthru
      _
    // Predicated region
    $region6: #{tpu_custom_call.1} parent=1 // pred_check
      _
    $region7: #{tpu_custom_call.1} parent=1 // pred_check_branch
      %16 = sbr.rel (0) target = $region9
    $region8: #{tpu_custom_call.1} parent=1 // pred_region
      %s18 = ssub.s32 384, 384
      %19 = vsyncadd [#allocation3], %s18
      %s20 = sshll.u32 [#allocation2], 4
      %s21 = int_to_ptr.vmem [resolvable:$true] %s20
      %26 = dma.hbm_to_vmem [thread:$0]  %s1, 384, %s21, [#allocation3], 128, 128, 8
    $region9: #{tpu_custom_call.1} parent=1 // pred_fallthru
      _
    // Predicated region
    $region10: #{tpu_custom_call.1} parent=1 // pred_check
      _
    $region11: #{tpu_custom_call.1} parent=1 // pred_check_branch
      %28 = sbr.rel (0) target = $region13
    $region12: #{tpu_custom_call.1} parent=1 // pred_region
      _
    $region13: #{tpu_custom_call.1} parent=1 // pred_fallthru
      _
    // Predicated region
    $region14: #{tpu_custom_call.1} parent=1 // pred_check
      _
    $region15: #{tpu_custom_call.1} parent=1 // pred_check_branch
      %30 = sbr.rel (0) target = $region17
    $region16: #{tpu_custom_call.1} parent=1 // pred_region
      _
    $region17: #{tpu_custom_call.1} parent=1 // pred_fallthru
      _
    // Predicated region
    $region18: #{tpu_custom_call.1} parent=1 // pred_check
      _
    $region19: #{tpu_custom_call.1} parent=1 // pred_check_branch
      %32 = sbr.rel (0) target = $region21
    $region20: #{tpu_custom_call.1} parent=1 // pred_region
      _
    $region21: #{tpu_custom_call.1} parent=1 // pred_fallthru
      _
    // Predicated region
    $region22: #{tpu_custom_call.1} parent=1 // pred_check
      _
    $region23: #{tpu_custom_call.1} parent=1 // pred_check_branch
      %34 = sbr.rel (0) target = $region25
    $region24: #{tpu_custom_call.1} parent=1 // pred_region
      _
    $region25: #{tpu_custom_call.1} parent=1 // pred_fallthru
      _
    // Predicated region
    $region26: #{tpu_custom_call.1} parent=1 // pred_check
      _
    $region27: #{tpu_custom_call.1} parent=1 // pred_check_branch
      %36 = sbr.rel (0) target = $region29
    $region28: #{tpu_custom_call.1} parent=1 // pred_region
      _
    $region29: #{tpu_custom_call.1} parent=1 // pred_fallthru
      _
    // Predicated region
    $region30: #{tpu_custom_call.1} parent=1 // pred_check
      _
    $region31: #{tpu_custom_call.1} parent=1 // pred_check_branch
      %38 = sbr.rel (0) target = $region33
    $region32: #{tpu_custom_call.1} parent=1 // pred_region
      %39 = dma.done [#allocation3], 384
    $region33: #{tpu_custom_call.1} parent=1 // pred_fallthru
      _
    %v40 = vld [vmem:[%s0] sm:$0xff]
    %v41 = vld [vmem:[#allocation2] sm:$0xff]
    %v42 = vld [vmem:[#allocation2 + $0x8] sm:$0xff]
    %v43 = vld [vmem:[#allocation2 + $0x10] sm:$0xf]
    %v44 = vld [vmem:[%s2] sm:$0x1]
    %v46 = vlaneseq
    %v47 = vshrl.u32 %v46, 7
    %v48 = vsub.s32 0, %v47
    %v49 = vrot.slane %v44, %v48
    %vm51 = vcmask 162816
    %v53 = vsel %vm51, %v40, 0
    %vm55 = vcmask 1043456
    %v57 = vsel %vm55, %v43, 0
    %59 = vmatprep.subr.mxu0 0.0
    %60 = vmatpush1.msra.mxu0 %v41
    %61 = vmatprep.subr.mxu0 0.0
    %62 = vmatpush1.msra.mxu0 %v42
    %63 = vmatprep.subr.mxu0 0.0
    %64 = vmatpush1.msra.mxu0 %v57
    %65 = vmatprep.subr.mxu0 0.0
    %66 = vmatpush1.msra.mxu0 0.0
    %67 = vmatprep.subr.mxu0 0.0
    %68 = vmatpush1.msra.mxu0 0.0
    %69 = vmatprep.subr.mxu0 0.0
    %70 = vmatpush1.msra.mxu0 0.0
    %71 = vmatprep.subr.mxu0 0.0
    %72 = vmatpush1.msra.mxu0 0.0
    %73 = vmatprep.subr.mxu0 0.0
    %74 = vmatpush1.msra.mxu0 0.0
    %75 = vmatprep.subr.mxu0 0.0
    %76 = vmatpush1.msra.mxu0 0.0
    %77 = vmatprep.subr.mxu0 0.0
    %78 = vmatpush1.msra.mxu0 0.0
    %79 = vmatprep.subr.mxu0 0.0
    %80 = vmatpush1.msra.mxu0 0.0
    %81 = vmatprep.subr.mxu0 0.0
    %82 = vmatpush1.msra.mxu0 0.0
    %83 = vmatprep.subr.mxu0 0.0
    %84 = vmatpush1.msra.mxu0 0.0
    %85 = vmatprep.subr.mxu0 0.0
    %86 = vmatpush1.msra.mxu0 0.0
    %87 = vmatprep.subr.mxu0 0.0
    %88 = vmatpush1.msra.mxu0 0.0
    %89 = vmatprep.subr.mxu0 0.0
    %90 = vmatpush1.msra.mxu0 0.0
    %91 = vmatprep.subr.mxu0 0.0
    %92 = vmatpush1.msra.mxu0 0.0
    %93 = vmatprep.subr.mxu0 0.0
    %94 = vmatpush1.msra.mxu0 0.0
    %95 = vmatprep.subr.mxu0 0.0
    %96 = vmatpush1.msra.mxu0 0.0
    %97 = vmatprep.subr.mxu0 0.0
    %98 = vmatpush1.msra.mxu0 0.0
    %99 = vmatprep.subr.mxu0 0.0
    %100 = vmatpush1.msra.mxu0 0.0
    %101 = vmatprep.subr.mxu0 0.0
    %102 = vmatpush1.msra.mxu0 0.0
    %103 = vmatprep.subr.mxu0 0.0
    %104 = vmatpush1.msra.mxu0 0.0
    %105 = vmatprep.subr.mxu0 0.0
    %106 = vmatpush1.msra.mxu0 0.0
    %107 = vmatprep.subr.mxu0 0.0
    %108 = vmatpush1.msra.mxu0 0.0
    %109 = vmatprep.subr.mxu0 0.0
    %110 = vmatpush1.msra.mxu0 0.0
    %111 = vmatprep.subr.mxu0 0.0
    %112 = vmatpush1.msra.mxu0 0.0
    %113 = vmatprep.subr.mxu0 0.0
    %114 = vmatpush1.msra.mxu0 0.0
    %115 = vmatprep.subr.mxu0 0.0
    %116 = vmatpush1.msra.mxu0 0.0
    %117 = vmatprep.subr.mxu0 0.0
    %118 = vmatpush1.msra.mxu0 0.0
    %119 = vmatprep.subr.mxu0 0.0
    %120 = vmatpush1.msra.mxu0 0.0
    %121 = vmatprep.subr.mxu0 0.0
    %122 = vmatpush1.msra.mxu0 0.0
    %123 = vmatprep.mubr.f32.mxu0 0.0
    %124 = vmatmul.mubr.f32.gmra.mrb[0].mxu0 %v53
    %v125 = vpop.f32.mrb[0].mxu0
    %v126 = vadd.f32 %v49, %v125
    %v127 = vpop.f32.mrb[0].mxu0
    %128 = vdwg.mxu0
    %v129 = vmax.f32 %v126, 0.0
    %v130 = vld [vmem:[%s3] sm:$0xff]
    %v131 = vld [vmem:[%s3 + $0x8] sm:$0xff]
    %v132 = vld [vmem:[%s3 + $0x10] sm:$0xff]
    %v133 = vld [vmem:[%s3 + $0x18] sm:$0xff]
    %v134 = vld [vmem:[%s3 + $0x20] sm:$0xff]
    %v135 = vld [vmem:[%s3 + $0x28] sm:$0xff]
    %v136 = vld [vmem:[%s3 + $0x30] sm:$0xff]
    %v137 = vld [vmem:[%s3 + $0x38] sm:$0xff]
    %v138 = vld [vmem:[%s4] sm:$0x1]
    %v140 = vlaneseq
    %v141 = vshrl.u32 %v140, 7
    %v142 = vsub.s32 0, %v141
    %v143 = vrot.slane %v138, %v142
    %vm145 = vcmask 523264
    %v147 = vsel %vm145, %v129, 0
    %149 = vmatprep.subr.mxu0 0.0
    %150 = vmatpush1.msra.mxu0 %v130
    %151 = vmatprep.subr.mxu0 0.0
    %152 = vmatpush1.msra.mxu0 %v131
    %153 = vmatprep.subr.mxu0 0.0
    %154 = vmatpush1.msra.mxu0 %v132
    %155 = vmatprep.subr.mxu0 0.0
    %156 = vmatpush1.msra.mxu0 %v133
    %157 = vmatprep.subr.mxu0 0.0
    %158 = vmatpush1.msra.mxu0 %v134
    %159 = vmatprep.subr.mxu0 0.0
    %160 = vmatpush1.msra.mxu0 %v135
    %161 = vmatprep.subr.mxu0 0.0
    %162 = vmatpush1.msra.mxu0 %v136
    %163 = vmatprep.subr.mxu0 0.0
    %164 = vmatpush1.msra.mxu0 %v137
    %165 = vmatprep.subr.mxu0 0.0
    %166 = vmatpush1.msra.mxu0 0.0
    %167 = vmatprep.subr.mxu0 0.0
    %168 = vmatpush1.msra.mxu0 0.0
    %169 = vmatprep.subr.mxu0 0.0
    %170 = vmatpush1.msra.mxu0 0.0
    %171 = vmatprep.subr.mxu0 0.0
    %172 = vmatpush1.msra.mxu0 0.0
    %173 = vmatprep.subr.mxu0 0.0
    %174 = vmatpush1.msra.mxu0 0.0
    %175 = vmatprep.subr.mxu0 0.0
    %176 = vmatpush1.msra.mxu0 0.0
    %177 = vmatprep.subr.mxu0 0.0
    %178 = vmatpush1.msra.mxu0 0.0
    %179 = vmatprep.subr.mxu0 0.0
    %180 = vmatpush1.msra.mxu0 0.0
    %181 = vmatprep.subr.mxu0 0.0
    %182 = vmatpush1.msra.mxu0 0.0
    %183 = vmatprep.subr.mxu0 0.0
    %184 = vmatpush1.msra.mxu0 0.0
    %185 = vmatprep.subr.mxu0 0.0
    %186 = vmatpush1.msra.mxu0 0.0
    %187 = vmatprep.subr.mxu0 0.0
    %188 = vmatpush1.msra.mxu0 0.0
    %189 = vmatprep.subr.mxu0 0.0
    %190 = vmatpush1.msra.mxu0 0.0
    %191 = vmatprep.subr.mxu0 0.0
    %192 = vmatpush1.msra.mxu0 0.0
    %193 = vmatprep.subr.mxu0 0.0
    %194 = vmatpush1.msra.mxu0 0.0
    %195 = vmatprep.subr.mxu0 0.0
    %196 = vmatpush1.msra.mxu0 0.0
    %197 = vmatprep.subr.mxu0 0.0
    %198 = vmatpush1.msra.mxu0 0.0
    %199 = vmatprep.subr.mxu0 0.0
    %200 = vmatpush1.msra.mxu0 0.0
    %201 = vmatprep.subr.mxu0 0.0
    %202 = vmatpush1.msra.mxu0 0.0
    %203 = vmatprep.subr.mxu0 0.0
    %204 = vmatpush1.msra.mxu0 0.0
    %205 = vmatprep.subr.mxu0 0.0
    %206 = vmatpush1.msra.mxu0 0.0
    %207 = vmatprep.subr.mxu0 0.0
    %208 = vmatpush1.msra.mxu0 0.0
    %209 = vmatprep.subr.mxu0 0.0
    %210 = vmatpush1.msra.mxu0 0.0
    %211 = vmatprep.subr.mxu0 0.0
    %212 = vmatpush1.msra.mxu0 0.0
    %213 = vmatprep.mubr.f32.mxu0 0.0
    %214 = vmatmul.mubr.f32.gmra.mrb[0].mxu0 %v147
    %v215 = vpop.f32.mrb[0].mxu0
    %v216 = vadd.f32 %v143, %v215
    %v217 = vpop.f32.mrb[0].mxu0
    %218 = vdwg.mxu0
    %v219 = vmax.f32 %v216, 0.0
    %v220 = vld [vmem:[%s5] sm:$0xff]
    %v221 = vld [vmem:[%s5 + $0x8] sm:$0xff]
    %v222 = vld [vmem:[%s5 + $0x10] sm:$0xff]
    %v223 = vld [vmem:[%s5 + $0x18] sm:$0xff]
    %v224 = vld [vmem:[%s5 + $0x20] sm:$0xff]
    %v225 = vld [vmem:[%s5 + $0x28] sm:$0xff]
    %v226 = vld [vmem:[%s5 + $0x30] sm:$0xff]
    %v227 = vld [vmem:[%s5 + $0x38] sm:$0xff]
    %v228 = vld [vmem:[%s6] sm:$0x1]
    %v230 = vlaneseq
    %v231 = vshrl.u32 %v230, 7
    %v232 = vsub.s32 0, %v231
    %v233 = vrot.slane %v228, %v232
    %v236 = vsel %vm145, %v219, 0
    %238 = vmatprep.subr.mxu0 0.0
    %239 = vmatpush1.msra.mxu0 %v220
    %240 = vmatprep.subr.mxu0 0.0
    %241 = vmatpush1.msra.mxu0 %v221
    %242 = vmatprep.subr.mxu0 0.0
    %243 = vmatpush1.msra.mxu0 %v222
    %244 = vmatprep.subr.mxu0 0.0
    %245 = vmatpush1.msra.mxu0 %v223
    %246 = vmatprep.subr.mxu0 0.0
    %247 = vmatpush1.msra.mxu0 %v224
    %248 = vmatprep.subr.mxu0 0.0
    %249 = vmatpush1.msra.mxu0 %v225
    %250 = vmatprep.subr.mxu0 0.0
    %251 = vmatpush1.msra.mxu0 %v226
    %252 = vmatprep.subr.mxu0 0.0
    %253 = vmatpush1.msra.mxu0 %v227
    %254 = vmatprep.subr.mxu0 0.0
    %255 = vmatpush1.msra.mxu0 0.0
    %256 = vmatprep.subr.mxu0 0.0
    %257 = vmatpush1.msra.mxu0 0.0
    %258 = vmatprep.subr.mxu0 0.0
    %259 = vmatpush1.msra.mxu0 0.0
    %260 = vmatprep.subr.mxu0 0.0
    %261 = vmatpush1.msra.mxu0 0.0
    %262 = vmatprep.subr.mxu0 0.0
    %263 = vmatpush1.msra.mxu0 0.0
    %264 = vmatprep.subr.mxu0 0.0
    %265 = vmatpush1.msra.mxu0 0.0
    %266 = vmatprep.subr.mxu0 0.0
    %267 = vmatpush1.msra.mxu0 0.0
    %268 = vmatprep.subr.mxu0 0.0
    %269 = vmatpush1.msra.mxu0 0.0
    %270 = vmatprep.subr.mxu0 0.0
    %271 = vmatpush1.msra.mxu0 0.0
    %272 = vmatprep.subr.mxu0 0.0
    %273 = vmatpush1.msra.mxu0 0.0
    %274 = vmatprep.subr.mxu0 0.0
    %275 = vmatpush1.msra.mxu0 0.0
    %276 = vmatprep.subr.mxu0 0.0
    %277 = vmatpush1.msra.mxu0 0.0
    %278 = vmatprep.subr.mxu0 0.0
    %279 = vmatpush1.msra.mxu0 0.0
    %280 = vmatprep.subr.mxu0 0.0
    %281 = vmatpush1.msra.mxu0 0.0
    %282 = vmatprep.subr.mxu0 0.0
    %283 = vmatpush1.msra.mxu0 0.0
    %284 = vmatprep.subr.mxu0 0.0
    %285 = vmatpush1.msra.mxu0 0.0
    %286 = vmatprep.subr.mxu0 0.0
    %287 = vmatpush1.msra.mxu0 0.0
    %288 = vmatprep.subr.mxu0 0.0
    %289 = vmatpush1.msra.mxu0 0.0
    %290 = vmatprep.subr.mxu0 0.0
    %291 = vmatpush1.msra.mxu0 0.0
    %292 = vmatprep.subr.mxu0 0.0
    %293 = vmatpush1.msra.mxu0 0.0
    %294 = vmatprep.subr.mxu0 0.0
    %295 = vmatpush1.msra.mxu0 0.0
    %296 = vmatprep.subr.mxu0 0.0
    %297 = vmatpush1.msra.mxu0 0.0
    %298 = vmatprep.subr.mxu0 0.0
    %299 = vmatpush1.msra.mxu0 0.0
    %300 = vmatprep.subr.mxu0 0.0
    %301 = vmatpush1.msra.mxu0 0.0
    %302 = vmatprep.mubr.f32.mxu0 0.0
    %303 = vmatmul.mubr.f32.gmra.mrb[0].mxu0 %v236
    %v304 = vpop.f32.mrb[0].mxu0
    %v305 = vadd.f32 %v233, %v304
    %v306 = vpop.f32.mrb[0].mxu0
    %307 = vdwg.mxu0
    %vm308 = vcmask 15360
    %309 = vst.msk [vmem:[%s7] sm:$0xff] %vm308, %v305
    // Predicated region
    $region34: #{tpu_custom_call.1} parent=1 // pred_check
      _
    $region35: #{tpu_custom_call.1} parent=1 // pred_check_branch
      %311 = sbr.rel (0) target = $region37
    $region36: #{tpu_custom_call.1} parent=1 // pred_region
      _
    $region37: #{tpu_custom_call.1} parent=1 // pred_fallthru
      _
    // Predicated region
    $region38: #{tpu_custom_call.1} parent=1 // pred_check
      _
    $region39: #{tpu_custom_call.1} parent=1 // pred_check_branch
      %313 = sbr.rel (0) target = $region41
    $region40: #{tpu_custom_call.1} parent=1 // pred_region
      _
    $region41: #{tpu_custom_call.1} parent=1 // pred_fallthru
      _
    %314 = vsyncpa [#allocation3], 1

</llo_original>
